<compile_context>
chip_gen: v5e
topology: v5e:2x2
jax: 0.10.0
libtpu: 0.0.40
codegen_flags: <defaults>
</compile_context>

<pallas_src>
import numpy as np
import jax
import jax.numpy as jnp
from jax.experimental import pallas as pl
from jax.experimental.pallas import tpu as pltpu

KERNEL_SIZE = 5
STDDEV = 1.0
NUM_LAYERS = 2


# --------------------- trace-time constant construction (numpy glue) ---------

def _gaussian_1d(kernel_size, stddev):
    """Normalized 1-D Gaussian taps; the PyTorch 2-D kernel is their outer product."""
    sigma = max(stddev, 0.5)
    radius = kernel_size // 2
    ks = 2 * radius + 1
    c = np.arange(ks, dtype=np.float64) - radius
    g = np.exp(-(c ** 2) / (2.0 * sigma ** 2))
    s = g.sum()
    if s == 0.0:
        g = g + 1e-10
        s = g.sum()
    return radius, g / s


def _conv_matrix(n, radius, taps):
    """(n,n) matrix M with (M @ v)[i] = sum_j taps[j]*v[i+j-radius], zero padded."""
    m = np.zeros((n, n), dtype=np.float64)
    for i in range(n):
        for j in range(2 * radius + 1):
            s = i + j - radius
            if 0 <= s < n:
                m[i, s] += taps[j]
    return m


def _resize_matrix(out_size, in_size):
    """Row weights of F.interpolate(mode='bilinear', align_corners=False)."""
    scale = in_size / out_size
    m = np.zeros((out_size, in_size), dtype=np.float64)
    for i in range(out_size):
        src = (i + 0.5) * scale - 0.5
        src = max(src, 0.0)
        i0 = min(int(np.floor(src)), in_size - 1)
        i1 = min(i0 + 1, in_size - 1)
        frac = src - i0
        m[i, i0] += 1.0 - frac
        m[i, i1] += frac
    return m


# ------------------------------ fused Pallas kernel --------------------------

def _fused_muller_kernel(scal_ref, lmats_ref, rmats_ref, x_ref, o_ref, y_ref):
    """One grid step = n_tile image planes packed along the SUBLANE axis.

    x_ref:     (1, n_tile*H, W)    planes stacked along rows (free reshape view)
    lmats_ref: (nv, Ho, H)         L_k = Rh @ Bv^k           (nv = num_layers+1)
    rmats_ref: (nv, W, Wo)         R_k = (Bw^k)^T @ Rw^T     (dense, NO block-diag)
    scal_ref:  (2*num_layers,)     SMEM [w0, b0, w1, b1, ...]
    o_ref:     (1, n_tile*Ho, Wo)
    y_ref:     (nv, n_tile*H, Wo)  VMEM scratch: W-contracted blur variants
    """
    nv, Ho, H = lmats_ref.shape
    n_tile = x_ref.shape[1] // H

    x = x_ref[0]                                        # (n_tile*H, W)

    # Dense, plane-batched W-contraction: one waste-free MXU GEMM per blur
    # variant (this carries the dominant FLOPs and has M = n_tile*H rows).
    for k in range(nv):                                 # static unroll (nv == 3)
        y_ref[k] = jnp.dot(x, rmats_ref[k], preferred_element_type=jnp.float32)

    # Per-plane H-contraction + incremental Laplacian residual accumulation
    # (only two t_k live at a time; the cheap VPU clip/add hides under the
    # next plane's MXU GEMMs).
    for p in range(n_tile):                             # static unroll
        r = p * H
        t_prev = jnp.dot(lmats_ref[0], y_ref[0, r:r + H, :],
                         preferred_element_type=jnp.float32)
        net = t_prev
        for l in range(nv - 1):
            t_cur = jnp.dot(lmats_ref[l + 1], y_ref[l + 1, r:r + H, :],
                            preferred_element_type=jnp.float32)
            w = scal_ref[2 * l]
            b = scal_ref[2 * l + 1]
            net = net + jnp.clip(w * (t_cur - t_prev) + b, 0.0, 1.0)
            t_prev = t_cur
        o_ref[0, p * Ho:(p + 1) * Ho, :] = net


# ------------------------------ tiling heuristics -----------------------------

def _round_up(v, m):
    return -(-v // m) * m


def _pick_tiling(N, H, W, Ho, Wo, nv, max_unroll=32):
    """Generation-aware n_tile / VMEM budget (64 MiB v7x vs 128 MiB v5e/v6e)."""
    try:
        vmem_cap = int(pltpu.get_tpu_info().vmem_capacity_bytes)
    except Exception:
        vmem_cap = 64 * 1024 * 1024            # conservative fallback (v7x-sized)
    vmem_limit = min(int(vmem_cap * 3 // 4), 100 * 1024 * 1024)

    wpad = max(_round_up(W, 128), 128)
    wopad = max(_round_up(Wo, 128), 128)
    # Constant matrices (double-buffered by the pipeline) -- no n_tile scaling.
    fixed = 2 * nv * (_round_up(Ho, 8) * _round_up(H, 128)
                      + _round_up(W, 8) * wopad) * 4
    per_plane = (2 * H * wpad            # x slab   (double-buffered)
                 + 2 * Ho * wopad        # out slab (double-buffered)
                 + nv * H * wopad) * 4   # y scratch (single-buffered)
    budget = max(vmem_limit // 2 - fixed, per_plane)   # headroom for vregs/compiler scratch
    n_tile = max(1, min(budget // per_plane, max_unroll, N))
    if N >= 2:
        # Keep >= 2 grid steps: v7x megacore split + DMA/compute pipelining;
        # costs nothing on v5e/v6e since sublane packing keeps lane width fixed.
        n_tile = min(n_tile, -(-N // 2))
    return int(n_tile), int(vmem_limit)


# ------------------------------ wrapper ---------------------------------------

def muller_resizer(x_nchw, target_size, weights, biases, *,
                   kernel_size=KERNEL_SIZE, stddev=STDDEV,
                   num_layers=NUM_LAYERS, n_tile=None):
    # TODO(synk): avg_pool pre-pooling and non-bilinear / antialias
    #             base_resize_method branches not implemented (module defaults:
    #             avg_pool=False, base_resize_method='bilinear', antialias=False).
    B, C, H, W = x_nchw.shape
    Ho, Wo = target_size
    N = B * C
    nv = num_layers + 1

    auto_tile, vmem_limit = _pick_tiling(N, H, W, Ho, Wo, nv)
    if n_tile is None:
        n_tile = auto_tile
    n_pad = (-N) % n_tile
    n_tot = N + n_pad
    num_tiles = n_tot // n_tile

    # ---- fold blur^k + bilinear resize into per-variant matrices (trace time)
    radius, g1 = _gaussian_1d(kernel_size, stddev)
    bv = _conv_matrix(H, radius, g1)          # vertical blur:   Bv @ x
    bwt = _conv_matrix(W, radius, g1).T       # horizontal blur: x @ Bw^T
    rh = _resize_matrix(Ho, H)                # Rh @ x
    rwt = _resize_matrix(Wo, W).T             # x @ Rw^T
    lmats_np, rmats_np = [], []
    bv_k = np.eye(H)
    bwt_k = np.eye(W)
    for _ in range(nv):
        lmats_np.append(rh @ bv_k)            # (Ho, H)
        rmats_np.append(bwt_k @ rwt)          # (W, Wo)   dense, NO block-diag
        bv_k = bv @ bv_k
        bwt_k = bwt_k @ bwt
    lmats = jnp.asarray(np.stack(lmats_np), dtype=jnp.float32)   # (nv, Ho, H)
    rmats = jnp.asarray(np.stack(rmats_np), dtype=jnp.float32)   # (nv, W, Wo)
    # TODO(synk): optional bf16 operand cast (2x MXU, half VMEM) kept off to
    #             preserve 1e-4 parity with the fp32 PyTorch module.

    if num_layers > 0:
        wb = []
        for l in range(num_layers):
            wb.append(jnp.reshape(weights[l], ()).astype(jnp.float32))
            wb.append(jnp.reshape(biases[l], ()).astype(jnp.float32))
        scal = jnp.stack(wb)                                      # (2*num_layers,)
    else:
        scal = jnp.zeros((1,), jnp.float32)

    # ---- layout: planes stacked along sublanes -> free contiguous views ------
    x = x_nchw.astype(jnp.float32).reshape(N, H, W)
    if n_pad:
        x = jnp.concatenate([x, jnp.zeros((n_pad, H, W), jnp.float32)], axis=0)
    xg = x.reshape(num_tiles, n_tile * H, W)          # contiguous view, no transpose

    out = pl.pallas_call(
        _fused_muller_kernel,
        out_shape=jax.ShapeDtypeStruct((num_tiles, n_tile * Ho, Wo), jnp.float32),
        grid=(num_tiles,),
        in_specs=[
            pl.BlockSpec(memory_space=pltpu.MemorySpace.SMEM),          # scalars
            pl.BlockSpec((nv, Ho, H), lambda i: (0, 0, 0)),             # L_k
            pl.BlockSpec((nv, W, Wo), lambda i: (0, 0, 0)),             # R_k
            pl.BlockSpec((1, n_tile * H, W), lambda i: (i, 0, 0)),      # x slabs
        ],
        out_specs=pl.BlockSpec((1, n_tile * Ho, Wo), lambda i: (i, 0, 0)),
        scratch_shapes=[pltpu.VMEM((nv, n_tile * H, Wo), jnp.float32)],
        compiler_params=pltpu.CompilerParams(
            dimension_semantics=("parallel",),
            vmem_limit_bytes=vmem_limit,
        ),
    )(scal, lmats, rmats, xg)

    # contiguous views again (padded planes trimmed by the [:N] slice)
    out = out.reshape(n_tot, Ho, Wo)[:N].reshape(B, C, Ho, Wo)
    return out


# --------------------- pure-JAX reference (original blur/resize path) ---------

def _reference(x_nchw, target_size, weights, biases,
               kernel_size=KERNEL_SIZE, stddev=STDDEV, num_layers=NUM_LAYERS):
    B, C, H, W = x_nchw.shape
    Ho, Wo = target_size
    sigma = max(stddev, 0.5)
    radius = kernel_size // 2
    ks = 2 * radius + 1
    c = np.arange(ks, dtype=np.float64) - radius
    xg_ = np.repeat(c[:, None], ks, axis=1)
    yg_ = np.repeat(c[None, :], ks, axis=0)
    k2 = np.exp(-(xg_ ** 2 + yg_ ** 2) / (2.0 * sigma ** 2))
    k2 = k2 / k2.sum()
    taps = jnp.asarray(k2, dtype=jnp.float32)
    rh = jnp.asarray(_resize_matrix(Ho, H), dtype=jnp.float32)
    rw = jnp.asarray(_resize_matrix(Wo, W), dtype=jnp.float32)

    def resize(z):                       # (n,H,W) -> (n,Ho,Wo)
        return jnp.einsum('oh,nhw,pw->nop', rh, z, rw)

    def blur(z):                         # zero-padded 5x5 depthwise conv
        zp = jnp.pad(z, ((0, 0), (radius, radius), (radius, radius)))
        out = jnp.zeros_like(z)
        for di in range(ks):
            for dj in range(ks):
                out = out + taps[di, dj] * zp[:, di:di + H, dj:dj + W]
        return out

    x = x_nchw.astype(jnp.float32).reshape(B * C, H, W)
    net = resize(x)
    cur = x
    for l in range(num_layers):
        blurred = blur(cur)
        rr = resize(blurred - cur)
        net = net + jnp.clip(weights[l][0] * rr + biases[l][0], 0.0, 1.0)
        cur = blurred
    return net.reshape(B, C, Ho, Wo)


# ----------------------------------- main -------------------------------------

if __name__ == "__main__":
    key = jax.random.PRNGKey(0)
    B, C, H, W = 2, 4, 16, 16
    target = (8, 8)
    x = jax.random.normal(key, (B, C, H, W), dtype=jnp.float32)

    # Deterministic "init_weights" (weight, bias) pairs for the 2 layers.
    init_weights = (0.3, 0.1, 0.2, -0.05)
    weights = [jnp.array([init_weights[2 * l]], dtype=jnp.float32)
               for l in range(NUM_LAYERS)]
    biases = [jnp.array([init_weights[2 * l + 1]], dtype=jnp.float32)
              for l in range(NUM_LAYERS)]

    out = muller_resizer(x, target, weights, biases)
    out = jax.block_until_ready(out)

    ref = _reference(x, target, weights, biases)
    assert out.shape == (B, C, target[0], target[1])
    np.testing.assert_allclose(np.asarray(out), np.asarray(ref),
                               atol=1e-4, rtol=1e-4)
    print("KERNEL_OK")
</pallas_src>

<mosaic_0001>
module attributes {stable_mosaic.version = 11 : i64} {
  func.func @_fused_muller_kernel(%arg0: i32, %arg1: memref<4xf32, #tpu.memory_space<smem>>, %arg2: memref<3x8x16xf32, #tpu.memory_space<vmem>>, %arg3: memref<3x16x8xf32, #tpu.memory_space<vmem>>, %arg4: memref<1x64x16xf32, #tpu.memory_space<vmem>>, %arg5: memref<1x32x8xf32, #tpu.memory_space<vmem>>, %arg6: memref<3x64x8xf32, #tpu.memory_space<vmem>>) attributes {dimension_semantics = [#tpu.dimension_semantics<parallel>], iteration_bounds = array<i64: 2>, scalar_prefetch = 0 : i64, scratch_operands = 1 : i64, tpu.core_type = #tpu.core_type<tc>, window_params = [{transform_indices = @transform_0, window_bounds = array<i64: 4>}, {pipeline_mode = #tpu.pipeline_mode<synchronous>, transform_indices = @transform_1, window_bounds = array<i64: 3, 8, 16>}, {pipeline_mode = #tpu.pipeline_mode<synchronous>, transform_indices = @transform_2, window_bounds = array<i64: 3, 16, 8>}, {transform_indices = @transform_3, window_bounds = array<i64: 1, 64, 16>}, {transform_indices = @transform_4, window_bounds = array<i64: 1, 32, 8>}]} {
    %c0 = arith.constant 0 : index
    %c0_0 = arith.constant 0 : index
    %c0_1 = arith.constant 0 : index
    %0 = vector.load %arg4[%c0, %c0_0, %c0_1] : memref<1x64x16xf32, #tpu.memory_space<vmem>>, vector<1x64x16xf32>
    %1 = vector.shape_cast %0 : vector<1x64x16xf32> to vector<64x16xf32>
    %c0_2 = arith.constant 0 : index
    %c0_3 = arith.constant 0 : index
    %c0_4 = arith.constant 0 : index
    %2 = vector.load %arg3[%c0_2, %c0_3, %c0_4] : memref<3x16x8xf32, #tpu.memory_space<vmem>>, vector<1x16x8xf32>
    %3 = vector.shape_cast %2 : vector<1x16x8xf32> to vector<16x8xf32>
    %cst = arith.constant dense<0.000000e+00> : vector<64x8xf32>
    %4 = tpu.matmul %1, %3, %cst {dimension_numbers = #tpu.dot_dimension_numbers<[1], [0], [0], [1], [0, 0, 1, 1], [], []>} : vector<64x16xf32>, vector<16x8xf32>, vector<64x8xf32> -> vector<64x8xf32>
    %c0_5 = arith.constant 0 : index
    %c0_6 = arith.constant 0 : index
    %c0_7 = arith.constant 0 : index
    %5 = vector.load %arg6[%c0_5, %c0_6, %c0_7] : memref<3x64x8xf32, #tpu.memory_space<vmem>>, vector<1x64x8xf32>
    %6 = vector.shape_cast %5 : vector<1x64x8xf32> to vector<64x8xf32>
    %7 = vector.shape_cast %4 : vector<64x8xf32> to vector<1x64x8xf32>
    tpu.vector_store %arg6[%c0_5, %c0_6, %c0_7], %7 {strides = array<i32>} : memref<3x64x8xf32, #tpu.memory_space<vmem>>, vector<1x64x8xf32>,
    %c1 = arith.constant 1 : index
    %c0_8 = arith.constant 0 : index
    %c0_9 = arith.constant 0 : index
    %8 = vector.load %arg3[%c1, %c0_8, %c0_9] : memref<3x16x8xf32, #tpu.memory_space<vmem>>, vector<1x16x8xf32>
    %9 = vector.shape_cast %8 : vector<1x16x8xf32> to vector<16x8xf32>
    %cst_10 = arith.constant dense<0.000000e+00> : vector<64x8xf32>
    %10 = tpu.matmul %1, %9, %cst_10 {dimension_numbers = #tpu.dot_dimension_numbers<[1], [0], [0], [1], [0, 0, 1, 1], [], []>} : vector<64x16xf32>, vector<16x8xf32>, vector<64x8xf32> -> vector<64x8xf32>
    %c1_11 = arith.constant 1 : index
    %c0_12 = arith.constant 0 : index
    %c0_13 = arith.constant 0 : index
    %11 = vector.load %arg6[%c1_11, %c0_12, %c0_13] : memref<3x64x8xf32, #tpu.memory_space<vmem>>, vector<1x64x8xf32>
    %12 = vector.shape_cast %11 : vector<1x64x8xf32> to vector<64x8xf32>
    %13 = vector.shape_cast %10 : vector<64x8xf32> to vector<1x64x8xf32>
    tpu.vector_store %arg6[%c1_11, %c0_12, %c0_13], %13 {strides = array<i32>} : memref<3x64x8xf32, #tpu.memory_space<vmem>>, vector<1x64x8xf32>,
    %c2 = arith.constant 2 : index
    %c0_14 = arith.constant 0 : index
    %c0_15 = arith.constant 0 : index
    %14 = vector.load %arg3[%c2, %c0_14, %c0_15] : memref<3x16x8xf32, #tpu.memory_space<vmem>>, vector<1x16x8xf32>
    %15 = vector.shape_cast %14 : vector<1x16x8xf32> to vector<16x8xf32>
    %cst_16 = arith.constant dense<0.000000e+00> : vector<64x8xf32>
    %16 = tpu.matmul %1, %15, %cst_16 {dimension_numbers = #tpu.dot_dimension_numbers<[1], [0], [0], [1], [0, 0, 1, 1], [], []>} : vector<64x16xf32>, vector<16x8xf32>, vector<64x8xf32> -> vector<64x8xf32>
    %c2_17 = arith.constant 2 : index
    %c0_18 = arith.constant 0 : index
    %c0_19 = arith.constant 0 : index
    %17 = vector.load %arg6[%c2_17, %c0_18, %c0_19] : memref<3x64x8xf32, #tpu.memory_space<vmem>>, vector<1x64x8xf32>
    %18 = vector.shape_cast %17 : vector<1x64x8xf32> to vector<64x8xf32>
    %19 = vector.shape_cast %16 : vector<64x8xf32> to vector<1x64x8xf32>
    tpu.vector_store %arg6[%c2_17, %c0_18, %c0_19], %19 {strides = array<i32>} : memref<3x64x8xf32, #tpu.memory_space<vmem>>, vector<1x64x8xf32>,
    %c0_20 = arith.constant 0 : index
    %c0_21 = arith.constant 0 : index
    %c0_22 = arith.constant 0 : index
    %20 = vector.load %arg2[%c0_20, %c0_21, %c0_22] : memref<3x8x16xf32, #tpu.memory_space<vmem>>, vector<1x8x16xf32>
    %21 = vector.shape_cast %20 : vector<1x8x16xf32> to vector<8x16xf32>
    %c0_23 = arith.constant 0 : index
    %c0_24 = arith.constant 0 : index
    %c0_25 = arith.constant 0 : index
    %22 = vector.load %arg6[%c0_23, %c0_24, %c0_25] : memref<3x64x8xf32, #tpu.memory_space<vmem>>, vector<1x16x8xf32>
    %23 = vector.shape_cast %22 : vector<1x16x8xf32> to vector<16x8xf32>
    %cst_26 = arith.constant dense<0.000000e+00> : vector<8x8xf32>
    %24 = tpu.matmul %21, %23, %cst_26 {dimension_numbers = #tpu.dot_dimension_numbers<[1], [0], [0], [1], [0, 0, 1, 1], [], []>} : vector<8x16xf32>, vector<16x8xf32>, vector<8x8xf32> -> vector<8x8xf32>
    %c1_27 = arith.constant 1 : index
    %c0_28 = arith.constant 0 : index
    %c0_29 = arith.constant 0 : index
    %25 = vector.load %arg2[%c1_27, %c0_28, %c0_29] : memref<3x8x16xf32, #tpu.memory_space<vmem>>, vector<1x8x16xf32>
    %26 = vector.shape_cast %25 : vector<1x8x16xf32> to vector<8x16xf32>
    %c1_30 = arith.constant 1 : index
    %c0_31 = arith.constant 0 : index
    %c0_32 = arith.constant 0 : index
    %27 = vector.load %arg6[%c1_30, %c0_31, %c0_32] : memref<3x64x8xf32, #tpu.memory_space<vmem>>, vector<1x16x8xf32>
    %28 = vector.shape_cast %27 : vector<1x16x8xf32> to vector<16x8xf32>
    %cst_33 = arith.constant dense<0.000000e+00> : vector<8x8xf32>
    %29 = tpu.matmul %26, %28, %cst_33 {dimension_numbers = #tpu.dot_dimension_numbers<[1], [0], [0], [1], [0, 0, 1, 1], [], []>} : vector<8x16xf32>, vector<16x8xf32>, vector<8x8xf32> -> vector<8x8xf32>
    %c0_34 = arith.constant 0 : index
    %30 = memref.load %arg1[%c0_34] : memref<4xf32, #tpu.memory_space<smem>>
    %c1_35 = arith.constant 1 : index
    %31 = memref.load %arg1[%c1_35] : memref<4xf32, #tpu.memory_space<smem>>
    %32 = arith.subf %29, %24 : vector<8x8xf32>
    %33 = vector.broadcast %30 : f32 to vector<8x8xf32>
    %34 = arith.mulf %33, %32 : vector<8x8xf32>
    %35 = vector.broadcast %31 : f32 to vector<8x8xf32>
    %36 = arith.addf %34, %35 : vector<8x8xf32>
    %cst_36 = arith.constant 0.000000e+00 : f32
    %cst_37 = arith.constant 1.000000e+00 : f32
    %37 = vector.broadcast %cst_36 : f32 to vector<8x8xf32>
    %38 = arith.maximumf %37, %36 : vector<8x8xf32>
    %39 = vector.broadcast %cst_37 : f32 to vector<8x8xf32>
    %40 = arith.minimumf %39, %38 : vector<8x8xf32>
    %41 = arith.addf %24, %40 : vector<8x8xf32>
    %c2_38 = arith.constant 2 : index
    %c0_39 = arith.constant 0 : index
    %c0_40 = arith.constant 0 : index
    %42 = vector.load %arg2[%c2_38, %c0_39, %c0_40] : memref<3x8x16xf32, #tpu.memory_space<vmem>>, vector<1x8x16xf32>
    %43 = vector.shape_cast %42 : vector<1x8x16xf32> to vector<8x16xf32>
    %c2_41 = arith.constant 2 : index
    %c0_42 = arith.constant 0 : index
    %c0_43 = arith.constant 0 : index
    %44 = vector.load %arg6[%c2_41, %c0_42, %c0_43] : memref<3x64x8xf32, #tpu.memory_space<vmem>>, vector<1x16x8xf32>
    %45 = vector.shape_cast %44 : vector<1x16x8xf32> to vector<16x8xf32>
    %cst_44 = arith.constant dense<0.000000e+00> : vector<8x8xf32>
    %46 = tpu.matmul %43, %45, %cst_44 {dimension_numbers = #tpu.dot_dimension_numbers<[1], [0], [0], [1], [0, 0, 1, 1], [], []>} : vector<8x16xf32>, vector<16x8xf32>, vector<8x8xf32> -> vector<8x8xf32>
    %c2_45 = arith.constant 2 : index
    %47 = memref.load %arg1[%c2_45] : memref<4xf32, #tpu.memory_space<smem>>
    %c3 = arith.constant 3 : index
    %48 = memref.load %arg1[%c3] : memref<4xf32, #tpu.memory_space<smem>>
    %49 = arith.subf %46, %29 : vector<8x8xf32>
    %50 = vector.broadcast %47 : f32 to vector<8x8xf32>
    %51 = arith.mulf %50, %49 : vector<8x8xf32>
    %52 = vector.broadcast %48 : f32 to vector<8x8xf32>
    %53 = arith.addf %51, %52 : vector<8x8xf32>
    %cst_46 = arith.constant 0.000000e+00 : f32
    %cst_47 = arith.constant 1.000000e+00 : f32
    %54 = vector.broadcast %cst_46 : f32 to vector<8x8xf32>
    %55 = arith.maximumf %54, %53 : vector<8x8xf32>
    %56 = vector.broadcast %cst_47 : f32 to vector<8x8xf32>
    %57 = arith.minimumf %56, %55 : vector<8x8xf32>
    %58 = arith.addf %41, %57 : vector<8x8xf32>
    %c0_48 = arith.constant 0 : index
    %c0_49 = arith.constant 0 : index
    %c0_50 = arith.constant 0 : index
    %59 = vector.load %arg5[%c0_48, %c0_49, %c0_50] : memref<1x32x8xf32, #tpu.memory_space<vmem>>, vector<1x8x8xf32>
    %60 = vector.shape_cast %59 : vector<1x8x8xf32> to vector<8x8xf32>
    %61 = vector.shape_cast %58 : vector<8x8xf32> to vector<1x8x8xf32>
    tpu.vector_store %arg5[%c0_48, %c0_49, %c0_50], %61 {strides = array<i32>} : memref<1x32x8xf32, #tpu.memory_space<vmem>>, vector<1x8x8xf32>,
    %c0_51 = arith.constant 0 : index
    %c0_52 = arith.constant 0 : index
    %c0_53 = arith.constant 0 : index
    %62 = vector.load %arg2[%c0_51, %c0_52, %c0_53] : memref<3x8x16xf32, #tpu.memory_space<vmem>>, vector<1x8x16xf32>
    %63 = vector.shape_cast %62 : vector<1x8x16xf32> to vector<8x16xf32>
    %c0_54 = arith.constant 0 : index
    %c16 = arith.constant 16 : index
    %c0_55 = arith.constant 0 : index
    %64 = vector.load %arg6[%c0_54, %c16, %c0_55] : memref<3x64x8xf32, #tpu.memory_space<vmem>>, vector<1x16x8xf32>
    %65 = vector.shape_cast %64 : vector<1x16x8xf32> to vector<16x8xf32>
    %cst_56 = arith.constant dense<0.000000e+00> : vector<8x8xf32>
    %66 = tpu.matmul %63, %65, %cst_56 {dimension_numbers = #tpu.dot_dimension_numbers<[1], [0], [0], [1], [0, 0, 1, 1], [], []>} : vector<8x16xf32>, vector<16x8xf32>, vector<8x8xf32> -> vector<8x8xf32>
    %c1_57 = arith.constant 1 : index
    %c0_58 = arith.constant 0 : index
    %c0_59 = arith.constant 0 : index
    %67 = vector.load %arg2[%c1_57, %c0_58, %c0_59] : memref<3x8x16xf32, #tpu.memory_space<vmem>>, vector<1x8x16xf32>
    %68 = vector.shape_cast %67 : vector<1x8x16xf32> to vector<8x16xf32>
    %c1_60 = arith.constant 1 : index
    %c16_61 = arith.constant 16 : index
    %c0_62 = arith.constant 0 : index
    %69 = vector.load %arg6[%c1_60, %c16_61, %c0_62] : memref<3x64x8xf32, #tpu.memory_space<vmem>>, vector<1x16x8xf32>
    %70 = vector.shape_cast %69 : vector<1x16x8xf32> to vector<16x8xf32>
    %cst_63 = arith.constant dense<0.000000e+00> : vector<8x8xf32>
    %71 = tpu.matmul %68, %70, %cst_63 {dimension_numbers = #tpu.dot_dimension_numbers<[1], [0], [0], [1], [0, 0, 1, 1], [], []>} : vector<8x16xf32>, vector<16x8xf32>, vector<8x8xf32> -> vector<8x8xf32>
    %c0_64 = arith.constant 0 : index
    %72 = memref.load %arg1[%c0_64] : memref<4xf32, #tpu.memory_space<smem>>
    %c1_65 = arith.constant 1 : index
    %73 = memref.load %arg1[%c1_65] : memref<4xf32, #tpu.memory_space<smem>>
    %74 = arith.subf %71, %66 : vector<8x8xf32>
    %75 = vector.broadcast %72 : f32 to vector<8x8xf32>
    %76 = arith.mulf %75, %74 : vector<8x8xf32>
    %77 = vector.broadcast %73 : f32 to vector<8x8xf32>
    %78 = arith.addf %76, %77 : vector<8x8xf32>
    %cst_66 = arith.constant 0.000000e+00 : f32
    %cst_67 = arith.constant 1.000000e+00 : f32
    %79 = vector.broadcast %cst_66 : f32 to vector<8x8xf32>
    %80 = arith.maximumf %79, %78 : vector<8x8xf32>
    %81 = vector.broadcast %cst_67 : f32 to vector<8x8xf32>
    %82 = arith.minimumf %81, %80 : vector<8x8xf32>
    %83 = arith.addf %66, %82 : vector<8x8xf32>
    %c2_68 = arith.constant 2 : index
    %c0_69 = arith.constant 0 : index
    %c0_70 = arith.constant 0 : index
    %84 = vector.load %arg2[%c2_68, %c0_69, %c0_70] : memref<3x8x16xf32, #tpu.memory_space<vmem>>, vector<1x8x16xf32>
    %85 = vector.shape_cast %84 : vector<1x8x16xf32> to vector<8x16xf32>
    %c2_71 = arith.constant 2 : index
    %c16_72 = arith.constant 16 : index
    %c0_73 = arith.constant 0 : index
    %86 = vector.load %arg6[%c2_71, %c16_72, %c0_73] : memref<3x64x8xf32, #tpu.memory_space<vmem>>, vector<1x16x8xf32>
    %87 = vector.shape_cast %86 : vector<1x16x8xf32> to vector<16x8xf32>
    %cst_74 = arith.constant dense<0.000000e+00> : vector<8x8xf32>
    %88 = tpu.matmul %85, %87, %cst_74 {dimension_numbers = #tpu.dot_dimension_numbers<[1], [0], [0], [1], [0, 0, 1, 1], [], []>} : vector<8x16xf32>, vector<16x8xf32>, vector<8x8xf32> -> vector<8x8xf32>
    %c2_75 = arith.constant 2 : index
    %89 = memref.load %arg1[%c2_75] : memref<4xf32, #tpu.memory_space<smem>>
    %c3_76 = arith.constant 3 : index
    %90 = memref.load %arg1[%c3_76] : memref<4xf32, #tpu.memory_space<smem>>
    %91 = arith.subf %88, %71 : vector<8x8xf32>
    %92 = vector.broadcast %89 : f32 to vector<8x8xf32>
    %93 = arith.mulf %92, %91 : vector<8x8xf32>
    %94 = vector.broadcast %90 : f32 to vector<8x8xf32>
    %95 = arith.addf %93, %94 : vector<8x8xf32>
    %cst_77 = arith.constant 0.000000e+00 : f32
    %cst_78 = arith.constant 1.000000e+00 : f32
    %96 = vector.broadcast %cst_77 : f32 to vector<8x8xf32>
    %97 = arith.maximumf %96, %95 : vector<8x8xf32>
    %98 = vector.broadcast %cst_78 : f32 to vector<8x8xf32>
    %99 = arith.minimumf %98, %97 : vector<8x8xf32>
    %100 = arith.addf %83, %99 : vector<8x8xf32>
    %c0_79 = arith.constant 0 : index
    %c8 = arith.constant 8 : index
    %c0_80 = arith.constant 0 : index
    %101 = vector.load %arg5[%c0_79, %c8, %c0_80] : memref<1x32x8xf32, #tpu.memory_space<vmem>>, vector<1x8x8xf32>
    %102 = vector.shape_cast %101 : vector<1x8x8xf32> to vector<8x8xf32>
    %103 = vector.shape_cast %100 : vector<8x8xf32> to vector<1x8x8xf32>
    tpu.vector_store %arg5[%c0_79, %c8, %c0_80], %103 {strides = array<i32>} : memref<1x32x8xf32, #tpu.memory_space<vmem>>, vector<1x8x8xf32>,
    %c0_81 = arith.constant 0 : index
    %c0_82 = arith.constant 0 : index
    %c0_83 = arith.constant 0 : index
    %104 = vector.load %arg2[%c0_81, %c0_82, %c0_83] : memref<3x8x16xf32, #tpu.memory_space<vmem>>, vector<1x8x16xf32>
    %105 = vector.shape_cast %104 : vector<1x8x16xf32> to vector<8x16xf32>
    %c0_84 = arith.constant 0 : index
    %c32 = arith.constant 32 : index
    %c0_85 = arith.constant 0 : index
    %106 = vector.load %arg6[%c0_84, %c32, %c0_85] : memref<3x64x8xf32, #tpu.memory_space<vmem>>, vector<1x16x8xf32>
    %107 = vector.shape_cast %106 : vector<1x16x8xf32> to vector<16x8xf32>
    %cst_86 = arith.constant dense<0.000000e+00> : vector<8x8xf32>
    %108 = tpu.matmul %105, %107, %cst_86 {dimension_numbers = #tpu.dot_dimension_numbers<[1], [0], [0], [1], [0, 0, 1, 1], [], []>} : vector<8x16xf32>, vector<16x8xf32>, vector<8x8xf32> -> vector<8x8xf32>
    %c1_87 = arith.constant 1 : index
    %c0_88 = arith.constant 0 : index
    %c0_89 = arith.constant 0 : index
    %109 = vector.load %arg2[%c1_87, %c0_88, %c0_89] : memref<3x8x16xf32, #tpu.memory_space<vmem>>, vector<1x8x16xf32>
    %110 = vector.shape_cast %109 : vector<1x8x16xf32> to vector<8x16xf32>
    %c1_90 = arith.constant 1 : index
    %c32_91 = arith.constant 32 : index
    %c0_92 = arith.constant 0 : index
    %111 = vector.load %arg6[%c1_90, %c32_91, %c0_92] : memref<3x64x8xf32, #tpu.memory_space<vmem>>, vector<1x16x8xf32>
    %112 = vector.shape_cast %111 : vector<1x16x8xf32> to vector<16x8xf32>
    %cst_93 = arith.constant dense<0.000000e+00> : vector<8x8xf32>
    %113 = tpu.matmul %110, %112, %cst_93 {dimension_numbers = #tpu.dot_dimension_numbers<[1], [0], [0], [1], [0, 0, 1, 1], [], []>} : vector<8x16xf32>, vector<16x8xf32>, vector<8x8xf32> -> vector<8x8xf32>
    %c0_94 = arith.constant 0 : index
    %114 = memref.load %arg1[%c0_94] : memref<4xf32, #tpu.memory_space<smem>>
    %c1_95 = arith.constant 1 : index
    %115 = memref.load %arg1[%c1_95] : memref<4xf32, #tpu.memory_space<smem>>
    %116 = arith.subf %113, %108 : vector<8x8xf32>
    %117 = vector.broadcast %114 : f32 to vector<8x8xf32>
    %118 = arith.mulf %117, %116 : vector<8x8xf32>
    %119 = vector.broadcast %115 : f32 to vector<8x8xf32>
    %120 = arith.addf %118, %119 : vector<8x8xf32>
    %cst_96 = arith.constant 0.000000e+00 : f32
    %cst_97 = arith.constant 1.000000e+00 : f32
    %121 = vector.broadcast %cst_96 : f32 to vector<8x8xf32>
    %122 = arith.maximumf %121, %120 : vector<8x8xf32>
    %123 = vector.broadcast %cst_97 : f32 to vector<8x8xf32>
    %124 = arith.minimumf %123, %122 : vector<8x8xf32>
    %125 = arith.addf %108, %124 : vector<8x8xf32>
    %c2_98 = arith.constant 2 : index
    %c0_99 = arith.constant 0 : index
    %c0_100 = arith.constant 0 : index
    %126 = vector.load %arg2[%c2_98, %c0_99, %c0_100] : memref<3x8x16xf32, #tpu.memory_space<vmem>>, vector<1x8x16xf32>
    %127 = vector.shape_cast %126 : vector<1x8x16xf32> to vector<8x16xf32>
    %c2_101 = arith.constant 2 : index
    %c32_102 = arith.constant 32 : index
    %c0_103 = arith.constant 0 : index
    %128 = vector.load %arg6[%c2_101, %c32_102, %c0_103] : memref<3x64x8xf32, #tpu.memory_space<vmem>>, vector<1x16x8xf32>
    %129 = vector.shape_cast %128 : vector<1x16x8xf32> to vector<16x8xf32>
    %cst_104 = arith.constant dense<0.000000e+00> : vector<8x8xf32>
    %130 = tpu.matmul %127, %129, %cst_104 {dimension_numbers = #tpu.dot_dimension_numbers<[1], [0], [0], [1], [0, 0, 1, 1], [], []>} : vector<8x16xf32>, vector<16x8xf32>, vector<8x8xf32> -> vector<8x8xf32>
    %c2_105 = arith.constant 2 : index
    %131 = memref.load %arg1[%c2_105] : memref<4xf32, #tpu.memory_space<smem>>
    %c3_106 = arith.constant 3 : index
    %132 = memref.load %arg1[%c3_106] : memref<4xf32, #tpu.memory_space<smem>>
    %133 = arith.subf %130, %113 : vector<8x8xf32>
    %134 = vector.broadcast %131 : f32 to vector<8x8xf32>
    %135 = arith.mulf %134, %133 : vector<8x8xf32>
    %136 = vector.broadcast %132 : f32 to vector<8x8xf32>
    %137 = arith.addf %135, %136 : vector<8x8xf32>
    %cst_107 = arith.constant 0.000000e+00 : f32
    %cst_108 = arith.constant 1.000000e+00 : f32
    %138 = vector.broadcast %cst_107 : f32 to vector<8x8xf32>
    %139 = arith.maximumf %138, %137 : vector<8x8xf32>
    %140 = vector.broadcast %cst_108 : f32 to vector<8x8xf32>
    %141 = arith.minimumf %140, %139 : vector<8x8xf32>
    %142 = arith.addf %125, %141 : vector<8x8xf32>
    %c0_109 = arith.constant 0 : index
    %c16_110 = arith.constant 16 : index
    %c0_111 = arith.constant 0 : index
    %143 = vector.load %arg5[%c0_109, %c16_110, %c0_111] : memref<1x32x8xf32, #tpu.memory_space<vmem>>, vector<1x8x8xf32>
    %144 = vector.shape_cast %143 : vector<1x8x8xf32> to vector<8x8xf32>
    %145 = vector.shape_cast %142 : vector<8x8xf32> to vector<1x8x8xf32>
    tpu.vector_store %arg5[%c0_109, %c16_110, %c0_111], %145 {strides = array<i32>} : memref<1x32x8xf32, #tpu.memory_space<vmem>>, vector<1x8x8xf32>,
    %c0_112 = arith.constant 0 : index
    %c0_113 = arith.constant 0 : index
    %c0_114 = arith.constant 0 : index
    %146 = vector.load %arg2[%c0_112, %c0_113, %c0_114] : memref<3x8x16xf32, #tpu.memory_space<vmem>>, vector<1x8x16xf32>
    %147 = vector.shape_cast %146 : vector<1x8x16xf32> to vector<8x16xf32>
    %c0_115 = arith.constant 0 : index
    %c48 = arith.constant 48 : index
    %c0_116 = arith.constant 0 : index
    %148 = vector.load %arg6[%c0_115, %c48, %c0_116] : memref<3x64x8xf32, #tpu.memory_space<vmem>>, vector<1x16x8xf32>
    %149 = vector.shape_cast %148 : vector<1x16x8xf32> to vector<16x8xf32>
    %cst_117 = arith.constant dense<0.000000e+00> : vector<8x8xf32>
    %150 = tpu.matmul %147, %149, %cst_117 {dimension_numbers = #tpu.dot_dimension_numbers<[1], [0], [0], [1], [0, 0, 1, 1], [], []>} : vector<8x16xf32>, vector<16x8xf32>, vector<8x8xf32> -> vector<8x8xf32>
    %c1_118 = arith.constant 1 : index
    %c0_119 = arith.constant 0 : index
    %c0_120 = arith.constant 0 : index
    %151 = vector.load %arg2[%c1_118, %c0_119, %c0_120] : memref<3x8x16xf32, #tpu.memory_space<vmem>>, vector<1x8x16xf32>
    %152 = vector.shape_cast %151 : vector<1x8x16xf32> to vector<8x16xf32>
    %c1_121 = arith.constant 1 : index
    %c48_122 = arith.constant 48 : index
    %c0_123 = arith.constant 0 : index
    %153 = vector.load %arg6[%c1_121, %c48_122, %c0_123] : memref<3x64x8xf32, #tpu.memory_space<vmem>>, vector<1x16x8xf32>
    %154 = vector.shape_cast %153 : vector<1x16x8xf32> to vector<16x8xf32>
    %cst_124 = arith.constant dense<0.000000e+00> : vector<8x8xf32>
    %155 = tpu.matmul %152, %154, %cst_124 {dimension_numbers = #tpu.dot_dimension_numbers<[1], [0], [0], [1], [0, 0, 1, 1], [], []>} : vector<8x16xf32>, vector<16x8xf32>, vector<8x8xf32> -> vector<8x8xf32>
    %c0_125 = arith.constant 0 : index
    %156 = memref.load %arg1[%c0_125] : memref<4xf32, #tpu.memory_space<smem>>
    %c1_126 = arith.constant 1 : index
    %157 = memref.load %arg1[%c1_126] : memref<4xf32, #tpu.memory_space<smem>>
    %158 = arith.subf %155, %150 : vector<8x8xf32>
    %159 = vector.broadcast %156 : f32 to vector<8x8xf32>
    %160 = arith.mulf %159, %158 : vector<8x8xf32>
    %161 = vector.broadcast %157 : f32 to vector<8x8xf32>
    %162 = arith.addf %160, %161 : vector<8x8xf32>
    %cst_127 = arith.constant 0.000000e+00 : f32
    %cst_128 = arith.constant 1.000000e+00 : f32
    %163 = vector.broadcast %cst_127 : f32 to vector<8x8xf32>
    %164 = arith.maximumf %163, %162 : vector<8x8xf32>
    %165 = vector.broadcast %cst_128 : f32 to vector<8x8xf32>
    %166 = arith.minimumf %165, %164 : vector<8x8xf32>
    %167 = arith.addf %150, %166 : vector<8x8xf32>
    %c2_129 = arith.constant 2 : index
    %c0_130 = arith.constant 0 : index
    %c0_131 = arith.constant 0 : index
    %168 = vector.load %arg2[%c2_129, %c0_130, %c0_131] : memref<3x8x16xf32, #tpu.memory_space<vmem>>, vector<1x8x16xf32>
    %169 = vector.shape_cast %168 : vector<1x8x16xf32> to vector<8x16xf32>
    %c2_132 = arith.constant 2 : index
    %c48_133 = arith.constant 48 : index
    %c0_134 = arith.constant 0 : index
    %170 = vector.load %arg6[%c2_132, %c48_133, %c0_134] : memref<3x64x8xf32, #tpu.memory_space<vmem>>, vector<1x16x8xf32>
    %171 = vector.shape_cast %170 : vector<1x16x8xf32> to vector<16x8xf32>
    %cst_135 = arith.constant dense<0.000000e+00> : vector<8x8xf32>
    %172 = tpu.matmul %169, %171, %cst_135 {dimension_numbers = #tpu.dot_dimension_numbers<[1], [0], [0], [1], [0, 0, 1, 1], [], []>} : vector<8x16xf32>, vector<16x8xf32>, vector<8x8xf32> -> vector<8x8xf32>
    %c2_136 = arith.constant 2 : index
    %173 = memref.load %arg1[%c2_136] : memref<4xf32, #tpu.memory_space<smem>>
    %c3_137 = arith.constant 3 : index
    %174 = memref.load %arg1[%c3_137] : memref<4xf32, #tpu.memory_space<smem>>
    %175 = arith.subf %172, %155 : vector<8x8xf32>
    %176 = vector.broadcast %173 : f32 to vector<8x8xf32>
    %177 = arith.mulf %176, %175 : vector<8x8xf32>
    %178 = vector.broadcast %174 : f32 to vector<8x8xf32>
    %179 = arith.addf %177, %178 : vector<8x8xf32>
    %cst_138 = arith.constant 0.000000e+00 : f32
    %cst_139 = arith.constant 1.000000e+00 : f32
    %180 = vector.broadcast %cst_138 : f32 to vector<8x8xf32>
    %181 = arith.maximumf %180, %179 : vector<8x8xf32>
    %182 = vector.broadcast %cst_139 : f32 to vector<8x8xf32>
    %183 = arith.minimumf %182, %181 : vector<8x8xf32>
    %184 = arith.addf %167, %183 : vector<8x8xf32>
    %c0_140 = arith.constant 0 : index
    %c24 = arith.constant 24 : index
    %c0_141 = arith.constant 0 : index
    %185 = vector.load %arg5[%c0_140, %c24, %c0_141] : memref<1x32x8xf32, #tpu.memory_space<vmem>>, vector<1x8x8xf32>
    %186 = vector.shape_cast %185 : vector<1x8x8xf32> to vector<8x8xf32>
    %187 = vector.shape_cast %184 : vector<8x8xf32> to vector<1x8x8xf32>
    tpu.vector_store %arg5[%c0_140, %c24, %c0_141], %187 {strides = array<i32>} : memref<1x32x8xf32, #tpu.memory_space<vmem>>, vector<1x8x8xf32>,
    return
  }
  func.func @transform_0(%arg0: i32) -> i32 {
    %c0_i32 = arith.constant 0 : i32
    %c0_i32_0 = arith.constant 0 : i32
    return %c0_i32 : i32
  }
  func.func @transform_1(%arg0: i32) -> (i32, i32, i32) {
    %c0_i32 = arith.constant 0 : i32
    %c0_i32_0 = arith.constant 0 : i32
    %c0_i32_1 = arith.constant 0 : i32
    %c0_i32_2 = arith.constant 0 : i32
    return %c0_i32, %c0_i32_0, %c0_i32_1 : i32, i32, i32
  }
  func.func @transform_2(%arg0: i32) -> (i32, i32, i32) {
    %c0_i32 = arith.constant 0 : i32
    %c0_i32_0 = arith.constant 0 : i32
    %c0_i32_1 = arith.constant 0 : i32
    %c0_i32_2 = arith.constant 0 : i32
    return %c0_i32, %c0_i32_0, %c0_i32_1 : i32, i32, i32
  }
  func.func @transform_3(%arg0: i32) -> (i32, i32, i32) {
    %c0_i32 = arith.constant 0 : i32
    %c0_i32_0 = arith.constant 0 : i32
    %c0_i32_1 = arith.constant 0 : i32
    return %arg0, %c0_i32, %c0_i32_0 : i32, i32, i32
  }
  func.func @transform_4(%arg0: i32) -> (i32, i32, i32) {
    %c0_i32 = arith.constant 0 : i32
    %c0_i32_0 = arith.constant 0 : i32
    %c0_i32_1 = arith.constant 0 : i32
    return %arg0, %c0_i32, %c0_i32_0 : i32, i32, i32
  }
}

</mosaic_0001>

<llo_original>
// kernel: tpu_custom_call.1
$region0: #{tpu_custom_call.1}
  #allocation0 [shape = 'u32[]', space=smem, size = 0x4, offset = 0x4, fixed_abs, tag = 'smem constant byte address 0x4 - core index']
  #allocation1 [shape = 'u32[72,128]{1,0:T(1,128)}', space=vmem, size = 0x9000, scoped, tag = 'internal scratch']
  #allocation2 [shape = 'f32[3,64,8]{2,1,0:T(8,128)}', space=vmem, size = 0x18000, scoped, tag = 'scratch operand']
  %s0 = inlined_call_operand.vmem [shape: f32[4], index: 0, kind: input, shape index: {}]
  %s1 = inlined_call_operand.vmem [shape: f32[3,8,16], index: 1, kind: input, shape index: {}]
  %s2 = inlined_call_operand.vmem [shape: f32[3,16,8], index: 2, kind: input, shape index: {}]
  %s3 = inlined_call_operand.vmem [shape: f32[2,64,16], index: 3, kind: input, shape index: {}]
  %s4 = inlined_call_operand.vmem [shape: f32[2,32,8], index: 4, kind: output, shape index: {}]
  %s5 = sld [smem:[#allocation0]]
  $region53: #{tpu_custom_call.1} parent=0
    _
  %s7 = ssub.s32 1, %s5
  %s8 = scalar_select 0, %s7, %s5
  $region1: #{tpu_custom_call.1} parent=0
    #allocation3 [shape = 'u8[512]{0}', space=smem, size = 0x200, scoped, tag = 'input window, operand 0, single buffered']
    #allocation4 [shape = 's32[2]{0}', space=sflag, size = 0x8, scoped, tag = 'scoped memory for tpu_custom_call.1']
    %9 = vsyncpa [#allocation4], 0
    loop: start=0, step=1, limit=4
    $region2: #{tpu_custom_call.1} parent=1 // loop_pre_header
      _
    $region3: #{tpu_custom_call.1} parent=1 // loop_header
      %s11 = sphi 0, %s15
      %p12 = scmp.ge.s32.totalorder %s11, 4
      %s19 = sphi 0, %s19
      %s21 = sphi 0, %s19
      %s22 = sphi 0, %s21
      %s36 = sphi 0, %s22
      %s40 = sphi 0, %s40
      %s42 = sphi 0, %s40
      %s43 = sphi 0, %s42
      %s57 = sphi 0, %s43
      %s61 = sphi 0, %s61
      %s63 = sphi 0, %s61
      %s64 = sphi 0, %s63
      %s78 = sphi 0, %s64
      %s84 = sphi 0, %s86
      %s87 = sphi 0, %s84
      %s88 = sphi 0, %s87
      %s104 = sphi 0, %s88
      %s110 = sphi 0, %s112
      %s113 = sphi 0, %s110
      %s114 = sphi 0, %s113
      %s130 = sphi 0, %s114
    $region4: #{tpu_custom_call.1} parent=1 // loop_header_branch
      %14 = sbr.rel (%p12) target = $region8
    $region5: #{tpu_custom_call.1} parent=1 // loop_body
      %s16 = ssub.s32 %s11, 1
      %s17 = ssub.s32 %s11, 2
      %s18 = sadd.s32 %s11, 1
      %s20 = sadd.s32 %s19, 1
      %p23 = scmp.eq.s32.totalorder %s11, 1
      %p24 = scmp.ne.s32.totalorder %s19, %s21
      %p25 = scmp.eq.s32.totalorder %s11, 0
      %p26 = por %p24, %p25
      %p27 = scmp.ne.s32.totalorder %s19, %s21
      %p28 = scmp.eq.s32.totalorder %s16, 1
      %p29 = por %p27, %p28
      %p30 = scmp.ne.s32.totalorder %s21, %s22
      %p31 = scmp.eq.s32.totalorder %s16, 0
      %p32 = por %p30, %p31
      %p33 = scmp.ne.s32.totalorder %s21, %s22
      %p34 = scmp.eq.s32.totalorder %s17, 1
      %p35 = por %p33, %p34
      %p37 = scmp.ne.s32.totalorder %s22, %s36
      %p38 = scmp.eq.s32.totalorder %s17, 0
      %p39 = por %p37, %p38
      %s41 = sadd.s32 %s40, 1
      %p44 = scmp.eq.s32.totalorder %s11, 1
      %p45 = scmp.ne.s32.totalorder %s40, %s42
      %p46 = scmp.eq.s32.totalorder %s11, 0
      %p47 = por %p45, %p46
      %p48 = scmp.ne.s32.totalorder %s40, %s42
      %p49 = scmp.eq.s32.totalorder %s16, 1
      %p50 = por %p48, %p49
      %p51 = scmp.ne.s32.totalorder %s42, %s43
      %p52 = scmp.eq.s32.totalorder %s16, 0
      %p53 = por %p51, %p52
      %p54 = scmp.ne.s32.totalorder %s42, %s43
      %p55 = scmp.eq.s32.totalorder %s17, 1
      %p56 = por %p54, %p55
      %p58 = scmp.ne.s32.totalorder %s43, %s57
      %p59 = scmp.eq.s32.totalorder %s17, 0
      %p60 = por %p58, %p59
      %s62 = sadd.s32 %s61, 1
      %p65 = scmp.eq.s32.totalorder %s11, 1
      %p66 = scmp.ne.s32.totalorder %s61, %s63
      %p67 = scmp.eq.s32.totalorder %s11, 0
      %p68 = por %p66, %p67
      %p69 = scmp.ne.s32.totalorder %s61, %s63
      %p70 = scmp.eq.s32.totalorder %s16, 1
      %p71 = por %p69, %p70
      %p72 = scmp.ne.s32.totalorder %s63, %s64
      %p73 = scmp.eq.s32.totalorder %s16, 0
      %p74 = por %p72, %p73
      %p75 = scmp.ne.s32.totalorder %s63, %s64
      %p76 = scmp.eq.s32.totalorder %s17, 1
      %p77 = por %p75, %p76
      %p79 = scmp.ne.s32.totalorder %s64, %s78
      %p80 = scmp.eq.s32.totalorder %s17, 0
      %p81 = por %p79, %p80
      %s82 = ssub.s32 %s11, %s18
      %p83 = scmp.eq.s32.totalorder %s82, 0
      %s85 = sadd.s32 %s84, 1
      %s86 = scalar_select %p83, %s84, %s85
      %p89 = pneg %p83
      %p90 = scmp.eq.s32.totalorder %s11, 1
      %p91 = por %p89, %p90
      %p92 = scmp.ne.s32.totalorder %s84, %s87
      %p93 = scmp.eq.s32.totalorder %s11, 0
      %p94 = por %p92, %p93
      %p95 = scmp.ne.s32.totalorder %s84, %s87
      %p96 = scmp.eq.s32.totalorder %s16, 1
      %p97 = por %p95, %p96
      %p98 = scmp.ne.s32.totalorder %s87, %s88
      %p99 = scmp.eq.s32.totalorder %s16, 0
      %p100 = por %p98, %p99
      %p101 = scmp.ne.s32.totalorder %s87, %s88
      %p102 = scmp.eq.s32.totalorder %s17, 1
      %p103 = por %p101, %p102
      %p105 = scmp.ne.s32.totalorder %s88, %s104
      %p106 = scmp.eq.s32.totalorder %s17, 0
      %p107 = por %p105, %p106
      %s108 = ssub.s32 %s11, %s18
      %p109 = scmp.eq.s32.totalorder %s108, 0
      %s111 = sadd.s32 %s110, 1
      %s112 = scalar_select %p109, %s110, %s111
      %p115 = pneg %p109
      %p116 = scmp.eq.s32.totalorder %s11, 1
      %p117 = por %p115, %p116
      %p118 = scmp.ne.s32.totalorder %s110, %s113
      %p119 = scmp.eq.s32.totalorder %s11, 0
      %p120 = por %p118, %p119
      %p121 = scmp.ne.s32.totalorder %s110, %s113
      %p122 = scmp.eq.s32.totalorder %s16, 1
      %p123 = por %p121, %p122
      %p124 = scmp.ne.s32.totalorder %s113, %s114
      %p125 = scmp.eq.s32.totalorder %s16, 0
      %p126 = por %p124, %p125
      %p127 = scmp.ne.s32.totalorder %s113, %s114
      %p128 = scmp.eq.s32.totalorder %s17, 1
      %p129 = por %p127, %p128
      %p131 = scmp.ne.s32.totalorder %s114, %s130
      %p132 = scmp.eq.s32.totalorder %s17, 0
      %p133 = por %p131, %p132
      %p134 = scmp.le.s32.totalorder 1, %s11
      %p135 = scmp.lt.s32.totalorder %s11, 3
      %p136 = pnand %p134, %p135
      %p137 = pneg %p136
      // Predicated region
      $region9: #{tpu_custom_call.1} parent=5 // pred_check
        _
      $region10: #{tpu_custom_call.1} parent=5 // pred_check_branch
        %139 = sbr.rel (%p136) target = $region12
      $region11: #{tpu_custom_call.1} parent=5 // pred_region
        %s140 = ssub.s32 %s11, 1
        // Predicated region
        $region13: #{tpu_custom_call.1} parent=11 // pred_check
          %p141 = pneg %p32
        $region14: #{tpu_custom_call.1} parent=11 // pred_check_branch
          %143 = sbr.rel (%p141) target = $region16
        $region15: #{tpu_custom_call.1} parent=11 // pred_region
          %145 = vsyncadd [#allocation4], 0
          %s147 = sshll.u32 %s0, 4
          %s148 = int_to_ptr.vmem [resolvable:$true] %s147
          %150 = dma.vmem_to_smem %s148, 16, [#allocation3], [#allocation4]
        $region16: #{tpu_custom_call.1} parent=11 // pred_fallthru
          _
        // Predicated region
        $region17: #{tpu_custom_call.1} parent=11 // pred_check
          %p151 = pneg %p53
        $region18: #{tpu_custom_call.1} parent=11 // pred_check_branch
          %153 = sbr.rel (%p151) target = $region20
        $region19: #{tpu_custom_call.1} parent=11 // pred_region
          _
        $region20: #{tpu_custom_call.1} parent=11 // pred_fallthru
          _
        // Predicated region
        $region21: #{tpu_custom_call.1} parent=11 // pred_check
          %p154 = pneg %p74
        $region22: #{tpu_custom_call.1} parent=11 // pred_check_branch
          %156 = sbr.rel (%p154) target = $region24
        $region23: #{tpu_custom_call.1} parent=11 // pred_region
          _
        $region24: #{tpu_custom_call.1} parent=11 // pred_fallthru
          _
      $region12: #{tpu_custom_call.1} parent=5 // pred_fallthru
        _
      %p157 = scmp.lt.s32.totalorder %s11, 2
      // Predicated region
      $region25: #{tpu_custom_call.1} parent=5 // pred_check
        %p158 = pneg %p157
      $region26: #{tpu_custom_call.1} parent=5 // pred_check_branch
        %160 = sbr.rel (%p158) target = $region28
      $region27: #{tpu_custom_call.1} parent=5 // pred_region
        // Predicated region
        $region29: #{tpu_custom_call.1} parent=27 // pred_check
          %p161 = pneg %p94
        $region30: #{tpu_custom_call.1} parent=27 // pred_check_branch
          %163 = sbr.rel (%p161) target = $region32
        $region31: #{tpu_custom_call.1} parent=27 // pred_region
          %p164 = scmp.lt.s32.totalorder %s11, 1
          %s165 = scalar_select %p164, %s11, 1
          %s166 = smul.addr %s165, 8
          %s167 = smul.addr %s166, 8
          %s168 = scalar_lea.vmem %s3, %s167
        $region32: #{tpu_custom_call.1} parent=27 // pred_fallthru
          _
      $region28: #{tpu_custom_call.1} parent=5 // pred_fallthru
        _
      %p169 = scmp.le.s32.totalorder 1, %s11
      %p170 = scmp.lt.s32.totalorder %s11, 3
      %p171 = pnand %p169, %p170
      %p172 = pneg %p171
      // Predicated region
      $region33: #{tpu_custom_call.1} parent=5 // pred_check
        _
      $region34: #{tpu_custom_call.1} parent=5 // pred_check_branch
        %174 = sbr.rel (%p171) target = $region36
      $region35: #{tpu_custom_call.1} parent=5 // pred_region
        %s175 = ssub.s32 %s11, 1
        // Predicated region
        $region37: #{tpu_custom_call.1} parent=35 // pred_check
          %p176 = pneg %p32
        $region38: #{tpu_custom_call.1} parent=35 // pred_check_branch
          %178 = sbr.rel (%p176) target = $region40
        $region39: #{tpu_custom_call.1} parent=35 // pred_region
          %180 = dma.done [#allocation4], 16
        $region40: #{tpu_custom_call.1} parent=35 // pred_fallthru
          _
        %181 = sfence
        %p182 = pneg %p32
        %p183 = pneg %p29
        %p184 = pneg %p53
        %p185 = pneg %p50
        %p186 = pneg %p74
        %p187 = pneg %p71
        %p188 = scmp.lt.s32.totalorder %s16, 1
        %s189 = scalar_select %p188, %s16, 1
        %s190 = smul.addr %s189, 8
        %s191 = smul.addr %s190, 8
        %s192 = scalar_lea.vmem %s3, %s191
        %p193 = pneg %p100
        %p194 = pneg %p97
        %p195 = pneg %p126
        %p196 = pneg %p123
        %p197 = scmp.lt.s32.totalorder %s16, 1
        %s198 = scalar_select %p197, %s16, 1
        %s199 = smul.addr %s198, 4
        %s200 = smul.addr %s199, 8
        %s201 = scalar_lea.vmem %s4, %s200
        %p202 = scmp.lt.s32.totalorder %s16, 1
        %s203 = scalar_select %p202, %s16, 1
        %s204 = smul.addr %s203, 8
        %s205 = smul.addr %s204, 8
        %s206 = scalar_lea.vmem %s3, %s205
        %p207 = scmp.lt.s32.totalorder %s16, 1
        %s208 = scalar_select %p207, %s16, 1
        %s209 = smul.addr %s208, 4
        %s210 = smul.addr %s209, 8
        %s211 = scalar_lea.vmem %s4, %s210
        %v212 = vld [vmem:[%s206] sm:$0xff]
        %v213 = vld [vmem:[%s206 + $0x8] sm:$0xff]
        %v214 = vld [vmem:[%s206 + $0x10] sm:$0xff]
        %v215 = vld [vmem:[%s206 + $0x18] sm:$0xff]
        %v216 = vld [vmem:[%s206 + $0x20] sm:$0xff]
        %v217 = vld [vmem:[%s206 + $0x28] sm:$0xff]
        %v218 = vld [vmem:[%s206 + $0x30] sm:$0xff]
        %v219 = vld [vmem:[%s206 + $0x38] sm:$0xff]
        %v220 = vld [vmem:[%s2] sm:$0xff]
        %v221 = vld [vmem:[%s2 + $0x8] sm:$0xff]
        %vm222 = vcmask 130048
        %v224 = vsel %vm222, %v212, 0
        %v227 = vsel %vm222, %v213, 0
        %v230 = vsel %vm222, %v214, 0
        %v233 = vsel %vm222, %v215, 0
        %v236 = vsel %vm222, %v216, 0
        %v239 = vsel %vm222, %v217, 0
        %v242 = vsel %vm222, %v218, 0
        %v245 = vsel %vm222, %v219, 0
        %247 = vmatpush.msra.mxu0 0.0
        %248 = vmatpush.msra.mxu0 0.0
        %249 = vmatpush.msra.mxu0 0.0
        %250 = vmatpush.msra.mxu0 0.0
        %251 = vmatpush.msra.mxu0 0.0
        %252 = vmatpush.msra.mxu0 0.0
        %253 = vmatpush.msra.mxu0 0.0
        %254 = vmatpush.msra.mxu0 0.0
        %255 = vmatpush.msra.mxu0 0.0
        %256 = vmatpush.msra.mxu0 0.0
        %257 = vmatpush.msra.mxu0 0.0
        %258 = vmatpush.msra.mxu0 0.0
        %259 = vmatpush.msra.mxu0 0.0
        %260 = vmatpush.msra.mxu0 0.0
        %261 = vmatpush.msra.mxu0 %v221
        %262 = vmatpush.msra.mxu0 %v220
        %263 = vmatmul.f32.gmra.mxu0 %v224
        %v264 = vpop.f32.mrf.mxu0
        %v265 = vadd.f32 0.0, %v264
        %266 = vmatmul.f32.gmra.mxu0 %v227
        %v267 = vpop.f32.mrf.mxu0
        %v268 = vadd.f32 0.0, %v267
        %269 = vmatmul.f32.gmra.mxu0 %v230
        %v270 = vpop.f32.mrf.mxu0
        %v271 = vadd.f32 0.0, %v270
        %272 = vmatmul.f32.gmra.mxu0 %v233
        %v273 = vpop.f32.mrf.mxu0
        %v274 = vadd.f32 0.0, %v273
        %275 = vmatmul.f32.gmra.mxu0 %v236
        %v276 = vpop.f32.mrf.mxu0
        %v277 = vadd.f32 0.0, %v276
        %278 = vmatmul.f32.gmra.mxu0 %v239
        %v279 = vpop.f32.mrf.mxu0
        %v280 = vadd.f32 0.0, %v279
        %281 = vmatmul.f32.gmra.mxu0 %v242
        %v282 = vpop.f32.mrf.mxu0
        %v283 = vadd.f32 0.0, %v282
        %284 = vmatmul.f32.gmra.mxu0 %v245
        %v285 = vpop.f32.mrf.mxu0
        %v286 = vadd.f32 0.0, %v285
        %287 = vdwg.mxu0
        %vm288 = vcmask 64512
        %289 = vst.msk [vmem:[#allocation2] sm:$0xff] %vm288, %v265
        %290 = vst.msk [vmem:[#allocation2 + $0x8] sm:$0xff] %vm288, %v268
        %291 = vst.msk [vmem:[#allocation2 + $0x10] sm:$0xff] %vm288, %v271
        %292 = vst.msk [vmem:[#allocation2 + $0x18] sm:$0xff] %vm288, %v274
        %293 = vst.msk [vmem:[#allocation2 + $0x20] sm:$0xff] %vm288, %v277
        %294 = vst.msk [vmem:[#allocation2 + $0x28] sm:$0xff] %vm288, %v280
        %295 = vst.msk [vmem:[#allocation2 + $0x30] sm:$0xff] %vm288, %v283
        %296 = vst.msk [vmem:[#allocation2 + $0x38] sm:$0xff] %vm288, %v286
        %s297 = scalar_lea.vmem %s2, 16
        %v298 = vld [vmem:[%s297] sm:$0xff]
        %v299 = vld [vmem:[%s297 + $0x8] sm:$0xff]
        %300 = vmatpush.msra.mxu0 0.0
        %301 = vmatpush.msra.mxu0 0.0
        %302 = vmatpush.msra.mxu0 0.0
        %303 = vmatpush.msra.mxu0 0.0
        %304 = vmatpush.msra.mxu0 0.0
        %305 = vmatpush.msra.mxu0 0.0
        %306 = vmatpush.msra.mxu0 0.0
        %307 = vmatpush.msra.mxu0 0.0
        %308 = vmatpush.msra.mxu0 0.0
        %309 = vmatpush.msra.mxu0 0.0
        %310 = vmatpush.msra.mxu0 0.0
        %311 = vmatpush.msra.mxu0 0.0
        %312 = vmatpush.msra.mxu0 0.0
        %313 = vmatpush.msra.mxu0 0.0
        %314 = vmatpush.msra.mxu0 %v299
        %315 = vmatpush.msra.mxu0 %v298
        %316 = vmatmul.f32.gmra.mxu0 %v224
        %v317 = vpop.f32.mrf.mxu0
        %v318 = vadd.f32 0.0, %v317
        %319 = vmatmul.f32.gmra.mxu0 %v227
        %v320 = vpop.f32.mrf.mxu0
        %v321 = vadd.f32 0.0, %v320
        %322 = vmatmul.f32.gmra.mxu0 %v230
        %v323 = vpop.f32.mrf.mxu0
        %v324 = vadd.f32 0.0, %v323
        %325 = vmatmul.f32.gmra.mxu0 %v233
        %v326 = vpop.f32.mrf.mxu0
        %v327 = vadd.f32 0.0, %v326
        %328 = vmatmul.f32.gmra.mxu0 %v236
        %v329 = vpop.f32.mrf.mxu0
        %v330 = vadd.f32 0.0, %v329
        %331 = vmatmul.f32.gmra.mxu0 %v239
        %v332 = vpop.f32.mrf.mxu0
        %v333 = vadd.f32 0.0, %v332
        %334 = vmatmul.f32.gmra.mxu0 %v242
        %v335 = vpop.f32.mrf.mxu0
        %v336 = vadd.f32 0.0, %v335
        %337 = vmatmul.f32.gmra.mxu0 %v245
        %v338 = vpop.f32.mrf.mxu0
        %v339 = vadd.f32 0.0, %v338
        %340 = vdwg.mxu0
        %s341 = scalar_lea.vmem [#allocation2], 64
        %342 = vst.msk [vmem:[%s341] sm:$0xff] %vm288, %v318
        %343 = vst.msk [vmem:[%s341 + $0x8] sm:$0xff] %vm288, %v321
        %344 = vst.msk [vmem:[%s341 + $0x10] sm:$0xff] %vm288, %v324
        %345 = vst.msk [vmem:[%s341 + $0x18] sm:$0xff] %vm288, %v327
        %346 = vst.msk [vmem:[%s341 + $0x20] sm:$0xff] %vm288, %v330
        %347 = vst.msk [vmem:[%s341 + $0x28] sm:$0xff] %vm288, %v333
        %348 = vst.msk [vmem:[%s341 + $0x30] sm:$0xff] %vm288, %v336
        %349 = vst.msk [vmem:[%s341 + $0x38] sm:$0xff] %vm288, %v339
        %s350 = scalar_lea.vmem %s2, 32
        %v351 = vld [vmem:[%s350] sm:$0xff]
        %v352 = vld [vmem:[%s350 + $0x8] sm:$0xff]
        %353 = vmatpush.msra.mxu0 0.0
        %354 = vmatpush.msra.mxu0 0.0
        %355 = vmatpush.msra.mxu0 0.0
        %356 = vmatpush.msra.mxu0 0.0
        %357 = vmatpush.msra.mxu0 0.0
        %358 = vmatpush.msra.mxu0 0.0
        %359 = vmatpush.msra.mxu0 0.0
        %360 = vmatpush.msra.mxu0 0.0
        %361 = vmatpush.msra.mxu0 0.0
        %362 = vmatpush.msra.mxu0 0.0
        %363 = vmatpush.msra.mxu0 0.0
        %364 = vmatpush.msra.mxu0 0.0
        %365 = vmatpush.msra.mxu0 0.0
        %366 = vmatpush.msra.mxu0 0.0
        %367 = vmatpush.msra.mxu0 %v352
        %368 = vmatpush.msra.mxu0 %v351
        %369 = vmatmul.f32.gmra.mxu0 %v224
        %v370 = vpop.f32.mrf.mxu0
        %v371 = vadd.f32 0.0, %v370
        %372 = vmatmul.f32.gmra.mxu0 %v227
        %v373 = vpop.f32.mrf.mxu0
        %v374 = vadd.f32 0.0, %v373
        %375 = vmatmul.f32.gmra.mxu0 %v230
        %v376 = vpop.f32.mrf.mxu0
        %v377 = vadd.f32 0.0, %v376
        %378 = vmatmul.f32.gmra.mxu0 %v233
        %v379 = vpop.f32.mrf.mxu0
        %v380 = vadd.f32 0.0, %v379
        %381 = vmatmul.f32.gmra.mxu0 %v236
        %v382 = vpop.f32.mrf.mxu0
        %v383 = vadd.f32 0.0, %v382
        %384 = vmatmul.f32.gmra.mxu0 %v239
        %v385 = vpop.f32.mrf.mxu0
        %v386 = vadd.f32 0.0, %v385
        %387 = vmatmul.f32.gmra.mxu0 %v242
        %v388 = vpop.f32.mrf.mxu0
        %v389 = vadd.f32 0.0, %v388
        %390 = vmatmul.f32.gmra.mxu0 %v245
        %v391 = vpop.f32.mrf.mxu0
        %v392 = vadd.f32 0.0, %v391
        %393 = vdwg.mxu0
        %s394 = scalar_lea.vmem [#allocation2], 128
        %395 = vst.msk [vmem:[%s394] sm:$0xff] %vm288, %v371
        %396 = vst.msk [vmem:[%s394 + $0x8] sm:$0xff] %vm288, %v374
        %397 = vst.msk [vmem:[%s394 + $0x10] sm:$0xff] %vm288, %v377
        %398 = vst.msk [vmem:[%s394 + $0x18] sm:$0xff] %vm288, %v380
        %399 = vst.msk [vmem:[%s394 + $0x20] sm:$0xff] %vm288, %v383
        %400 = vst.msk [vmem:[%s394 + $0x28] sm:$0xff] %vm288, %v386
        %401 = vst.msk [vmem:[%s394 + $0x30] sm:$0xff] %vm288, %v389
        %402 = vst.msk [vmem:[%s394 + $0x38] sm:$0xff] %vm288, %v392
        %v403 = vld [vmem:[%s1] sm:$0xff]
        %v404 = vld [vmem:[#allocation2] sm:$0xff]
        %v405 = vld [vmem:[#allocation2 + $0x8] sm:$0xff]
        %v407 = vsel %vm222, %v403, 0
        %409 = vmatpush.msra.mxu0 0.0
        %410 = vmatpush.msra.mxu0 0.0
        %411 = vmatpush.msra.mxu0 0.0
        %412 = vmatpush.msra.mxu0 0.0
        %413 = vmatpush.msra.mxu0 0.0
        %414 = vmatpush.msra.mxu0 0.0
        %415 = vmatpush.msra.mxu0 0.0
        %416 = vmatpush.msra.mxu0 0.0
        %417 = vmatpush.msra.mxu0 0.0
        %418 = vmatpush.msra.mxu0 0.0
        %419 = vmatpush.msra.mxu0 0.0
        %420 = vmatpush.msra.mxu0 0.0
        %421 = vmatpush.msra.mxu0 0.0
        %422 = vmatpush.msra.mxu0 0.0
        %423 = vmatpush.msra.mxu0 %v405
        %424 = vmatpush.msra.mxu0 %v404
        %425 = vmatmul.f32.gmra.mxu0 %v407
        %v426 = vpop.f32.mrf.mxu0
        %v427 = vadd.f32 0.0, %v426
        %428 = vdwg.mxu0
        %s429 = scalar_lea.vmem %s1, 8
        %v430 = vld [vmem:[%s429] sm:$0xff]
        %v431 = vld [vmem:[%s341] sm:$0xff]
        %v432 = vld [vmem:[%s341 + $0x8] sm:$0xff]
        %v434 = vsel %vm222, %v430, 0
        %436 = vmatpush.msra.mxu0 0.0
        %437 = vmatpush.msra.mxu0 0.0
        %438 = vmatpush.msra.mxu0 0.0
        %439 = vmatpush.msra.mxu0 0.0
        %440 = vmatpush.msra.mxu0 0.0
        %441 = vmatpush.msra.mxu0 0.0
        %442 = vmatpush.msra.mxu0 0.0
        %443 = vmatpush.msra.mxu0 0.0
        %444 = vmatpush.msra.mxu0 0.0
        %445 = vmatpush.msra.mxu0 0.0
        %446 = vmatpush.msra.mxu0 0.0
        %447 = vmatpush.msra.mxu0 0.0
        %448 = vmatpush.msra.mxu0 0.0
        %449 = vmatpush.msra.mxu0 0.0
        %450 = vmatpush.msra.mxu0 %v432
        %451 = vmatpush.msra.mxu0 %v431
        %452 = vmatmul.f32.gmra.mxu0 %v434
        %v453 = vpop.f32.mrf.mxu0
        %v454 = vadd.f32 0.0, %v453
        %455 = vdwg.mxu0
        %s456 = sld [smem:[#allocation3]]
        %s457 = sld [smem:[#allocation3 + $0x1]]
        %v458 = vsub.f32 %v454, %v427
        %v459 = vstv %s456
        %v460 = vmul.f32 %v459, %v458
        %v461 = vstv %s457
        %v462 = vadd.f32 %v460, %v461
        %v463 = vmax.f32 %v462, 0.0
        %v464 = vmin.f32 %v463, 1.0
        %v465 = vadd.f32 %v427, %v464
        %s466 = scalar_lea.vmem %s1, 16
        %v467 = vld [vmem:[%s466] sm:$0xff]
        %v468 = vld [vmem:[%s394] sm:$0xff]
        %v469 = vld [vmem:[%s394 + $0x8] sm:$0xff]
        %v471 = vsel %vm222, %v467, 0
        %473 = vmatpush.msra.mxu0 0.0
        %474 = vmatpush.msra.mxu0 0.0
        %475 = vmatpush.msra.mxu0 0.0
        %476 = vmatpush.msra.mxu0 0.0
        %477 = vmatpush.msra.mxu0 0.0
        %478 = vmatpush.msra.mxu0 0.0
        %479 = vmatpush.msra.mxu0 0.0
        %480 = vmatpush.msra.mxu0 0.0
        %481 = vmatpush.msra.mxu0 0.0
        %482 = vmatpush.msra.mxu0 0.0
        %483 = vmatpush.msra.mxu0 0.0
        %484 = vmatpush.msra.mxu0 0.0
        %485 = vmatpush.msra.mxu0 0.0
        %486 = vmatpush.msra.mxu0 0.0
        %487 = vmatpush.msra.mxu0 %v469
        %488 = vmatpush.msra.mxu0 %v468
        %489 = vmatmul.f32.gmra.mxu0 %v471
        %v490 = vpop.f32.mrf.mxu0
        %v491 = vadd.f32 0.0, %v490
        %492 = vdwg.mxu0
        %s493 = sld [smem:[#allocation3 + $0x2]]
        %s494 = sld [smem:[#allocation3 + $0x3]]
        %v495 = vsub.f32 %v491, %v454
        %v496 = vstv %s493
        %v497 = vmul.f32 %v496, %v495
        %v498 = vstv %s494
        %v499 = vadd.f32 %v497, %v498
        %v500 = vmax.f32 %v499, 0.0
        %v501 = vmin.f32 %v500, 1.0
        %v502 = vadd.f32 %v465, %v501
        %503 = vst.msk [vmem:[%s211] sm:$0xff] %vm288, %v502
        %v504 = vld [vmem:[%s1] sm:$0xff]
        %v505 = vld [vmem:[#allocation2 + $0x10] sm:$0xff]
        %v506 = vld [vmem:[#allocation2 + $0x18] sm:$0xff]
        %v508 = vsel %vm222, %v504, 0
        %510 = vmatpush.msra.mxu0 0.0
        %511 = vmatpush.msra.mxu0 0.0
        %512 = vmatpush.msra.mxu0 0.0
        %513 = vmatpush.msra.mxu0 0.0
        %514 = vmatpush.msra.mxu0 0.0
        %515 = vmatpush.msra.mxu0 0.0
        %516 = vmatpush.msra.mxu0 0.0
        %517 = vmatpush.msra.mxu0 0.0
        %518 = vmatpush.msra.mxu0 0.0
        %519 = vmatpush.msra.mxu0 0.0
        %520 = vmatpush.msra.mxu0 0.0
        %521 = vmatpush.msra.mxu0 0.0
        %522 = vmatpush.msra.mxu0 0.0
        %523 = vmatpush.msra.mxu0 0.0
        %524 = vmatpush.msra.mxu0 %v506
        %525 = vmatpush.msra.mxu0 %v505
        %526 = vmatmul.f32.gmra.mxu0 %v508
        %v527 = vpop.f32.mrf.mxu0
        %v528 = vadd.f32 0.0, %v527
        %529 = vdwg.mxu0
        %v530 = vld [vmem:[%s429] sm:$0xff]
        %v531 = vld [vmem:[%s341 + $0x10] sm:$0xff]
        %v532 = vld [vmem:[%s341 + $0x18] sm:$0xff]
        %v534 = vsel %vm222, %v530, 0
        %536 = vmatpush.msra.mxu0 0.0
        %537 = vmatpush.msra.mxu0 0.0
        %538 = vmatpush.msra.mxu0 0.0
        %539 = vmatpush.msra.mxu0 0.0
        %540 = vmatpush.msra.mxu0 0.0
        %541 = vmatpush.msra.mxu0 0.0
        %542 = vmatpush.msra.mxu0 0.0
        %543 = vmatpush.msra.mxu0 0.0
        %544 = vmatpush.msra.mxu0 0.0
        %545 = vmatpush.msra.mxu0 0.0
        %546 = vmatpush.msra.mxu0 0.0
        %547 = vmatpush.msra.mxu0 0.0
        %548 = vmatpush.msra.mxu0 0.0
        %549 = vmatpush.msra.mxu0 0.0
        %550 = vmatpush.msra.mxu0 %v532
        %551 = vmatpush.msra.mxu0 %v531
        %552 = vmatmul.f32.gmra.mxu0 %v534
        %v553 = vpop.f32.mrf.mxu0
        %v554 = vadd.f32 0.0, %v553
        %555 = vdwg.mxu0
        %s556 = sld [smem:[#allocation3]]
        %s557 = sld [smem:[#allocation3 + $0x1]]
        %v558 = vsub.f32 %v554, %v528
        %v559 = vstv %s556
        %v560 = vmul.f32 %v559, %v558
        %v561 = vstv %s557
        %v562 = vadd.f32 %v560, %v561
        %v563 = vmax.f32 %v562, 0.0
        %v564 = vmin.f32 %v563, 1.0
        %v565 = vadd.f32 %v528, %v564
        %v566 = vld [vmem:[%s466] sm:$0xff]
        %v567 = vld [vmem:[%s394 + $0x10] sm:$0xff]
        %v568 = vld [vmem:[%s394 + $0x18] sm:$0xff]
        %v570 = vsel %vm222, %v566, 0
        %572 = vmatpush.msra.mxu0 0.0
        %573 = vmatpush.msra.mxu0 0.0
        %574 = vmatpush.msra.mxu0 0.0
        %575 = vmatpush.msra.mxu0 0.0
        %576 = vmatpush.msra.mxu0 0.0
        %577 = vmatpush.msra.mxu0 0.0
        %578 = vmatpush.msra.mxu0 0.0
        %579 = vmatpush.msra.mxu0 0.0
        %580 = vmatpush.msra.mxu0 0.0
        %581 = vmatpush.msra.mxu0 0.0
        %582 = vmatpush.msra.mxu0 0.0
        %583 = vmatpush.msra.mxu0 0.0
        %584 = vmatpush.msra.mxu0 0.0
        %585 = vmatpush.msra.mxu0 0.0
        %586 = vmatpush.msra.mxu0 %v568
        %587 = vmatpush.msra.mxu0 %v567
        %588 = vmatmul.f32.gmra.mxu0 %v570
        %v589 = vpop.f32.mrf.mxu0
        %v590 = vadd.f32 0.0, %v589
        %591 = vdwg.mxu0
        %s592 = sld [smem:[#allocation3 + $0x2]]
        %s593 = sld [smem:[#allocation3 + $0x3]]
        %v594 = vsub.f32 %v590, %v554
        %v595 = vstv %s592
        %v596 = vmul.f32 %v595, %v594
        %v597 = vstv %s593
        %v598 = vadd.f32 %v596, %v597
        %v599 = vmax.f32 %v598, 0.0
        %v600 = vmin.f32 %v599, 1.0
        %v601 = vadd.f32 %v565, %v600
        %602 = vst.msk [vmem:[%s211 + $0x8] sm:$0xff] %vm288, %v601
        %v603 = vld [vmem:[%s1] sm:$0xff]
        %v604 = vld [vmem:[#allocation2 + $0x20] sm:$0xff]
        %v605 = vld [vmem:[#allocation2 + $0x28] sm:$0xff]
        %v607 = vsel %vm222, %v603, 0
        %609 = vmatpush.msra.mxu0 0.0
        %610 = vmatpush.msra.mxu0 0.0
        %611 = vmatpush.msra.mxu0 0.0
        %612 = vmatpush.msra.mxu0 0.0
        %613 = vmatpush.msra.mxu0 0.0
        %614 = vmatpush.msra.mxu0 0.0
        %615 = vmatpush.msra.mxu0 0.0
        %616 = vmatpush.msra.mxu0 0.0
        %617 = vmatpush.msra.mxu0 0.0
        %618 = vmatpush.msra.mxu0 0.0
        %619 = vmatpush.msra.mxu0 0.0
        %620 = vmatpush.msra.mxu0 0.0
        %621 = vmatpush.msra.mxu0 0.0
        %622 = vmatpush.msra.mxu0 0.0
        %623 = vmatpush.msra.mxu0 %v605
        %624 = vmatpush.msra.mxu0 %v604
        %625 = vmatmul.f32.gmra.mxu0 %v607
        %v626 = vpop.f32.mrf.mxu0
        %v627 = vadd.f32 0.0, %v626
        %628 = vdwg.mxu0
        %v629 = vld [vmem:[%s429] sm:$0xff]
        %v630 = vld [vmem:[%s341 + $0x20] sm:$0xff]
        %v631 = vld [vmem:[%s341 + $0x28] sm:$0xff]
        %v633 = vsel %vm222, %v629, 0
        %635 = vmatpush.msra.mxu0 0.0
        %636 = vmatpush.msra.mxu0 0.0
        %637 = vmatpush.msra.mxu0 0.0
        %638 = vmatpush.msra.mxu0 0.0
        %639 = vmatpush.msra.mxu0 0.0
        %640 = vmatpush.msra.mxu0 0.0
        %641 = vmatpush.msra.mxu0 0.0
        %642 = vmatpush.msra.mxu0 0.0
        %643 = vmatpush.msra.mxu0 0.0
        %644 = vmatpush.msra.mxu0 0.0
        %645 = vmatpush.msra.mxu0 0.0
        %646 = vmatpush.msra.mxu0 0.0
        %647 = vmatpush.msra.mxu0 0.0
        %648 = vmatpush.msra.mxu0 0.0
        %649 = vmatpush.msra.mxu0 %v631
        %650 = vmatpush.msra.mxu0 %v630
        %651 = vmatmul.f32.gmra.mxu0 %v633
        %v652 = vpop.f32.mrf.mxu0
        %v653 = vadd.f32 0.0, %v652
        %654 = vdwg.mxu0
        %s655 = sld [smem:[#allocation3]]
        %s656 = sld [smem:[#allocation3 + $0x1]]
        %v657 = vsub.f32 %v653, %v627
        %v658 = vstv %s655
        %v659 = vmul.f32 %v658, %v657
        %v660 = vstv %s656
        %v661 = vadd.f32 %v659, %v660
        %v662 = vmax.f32 %v661, 0.0
        %v663 = vmin.f32 %v662, 1.0
        %v664 = vadd.f32 %v627, %v663
        %v665 = vld [vmem:[%s466] sm:$0xff]
        %v666 = vld [vmem:[%s394 + $0x20] sm:$0xff]
        %v667 = vld [vmem:[%s394 + $0x28] sm:$0xff]
        %v669 = vsel %vm222, %v665, 0
        %671 = vmatpush.msra.mxu0 0.0
        %672 = vmatpush.msra.mxu0 0.0
        %673 = vmatpush.msra.mxu0 0.0
        %674 = vmatpush.msra.mxu0 0.0
        %675 = vmatpush.msra.mxu0 0.0
        %676 = vmatpush.msra.mxu0 0.0
        %677 = vmatpush.msra.mxu0 0.0
        %678 = vmatpush.msra.mxu0 0.0
        %679 = vmatpush.msra.mxu0 0.0
        %680 = vmatpush.msra.mxu0 0.0
        %681 = vmatpush.msra.mxu0 0.0
        %682 = vmatpush.msra.mxu0 0.0
        %683 = vmatpush.msra.mxu0 0.0
        %684 = vmatpush.msra.mxu0 0.0
        %685 = vmatpush.msra.mxu0 %v667
        %686 = vmatpush.msra.mxu0 %v666
        %687 = vmatmul.f32.gmra.mxu0 %v669
        %v688 = vpop.f32.mrf.mxu0
        %v689 = vadd.f32 0.0, %v688
        %690 = vdwg.mxu0
        %s691 = sld [smem:[#allocation3 + $0x2]]
        %s692 = sld [smem:[#allocation3 + $0x3]]
        %v693 = vsub.f32 %v689, %v653
        %v694 = vstv %s691
        %v695 = vmul.f32 %v694, %v693
        %v696 = vstv %s692
        %v697 = vadd.f32 %v695, %v696
        %v698 = vmax.f32 %v697, 0.0
        %v699 = vmin.f32 %v698, 1.0
        %v700 = vadd.f32 %v664, %v699
        %701 = vst.msk [vmem:[%s211 + $0x10] sm:$0xff] %vm288, %v700
        %v702 = vld [vmem:[%s1] sm:$0xff]
        %v703 = vld [vmem:[#allocation2 + $0x30] sm:$0xff]
        %v704 = vld [vmem:[#allocation2 + $0x38] sm:$0xff]
        %v706 = vsel %vm222, %v702, 0
        %708 = vmatpush.msra.mxu0 0.0
        %709 = vmatpush.msra.mxu0 0.0
        %710 = vmatpush.msra.mxu0 0.0
        %711 = vmatpush.msra.mxu0 0.0
        %712 = vmatpush.msra.mxu0 0.0
        %713 = vmatpush.msra.mxu0 0.0
        %714 = vmatpush.msra.mxu0 0.0
        %715 = vmatpush.msra.mxu0 0.0
        %716 = vmatpush.msra.mxu0 0.0
        %717 = vmatpush.msra.mxu0 0.0
        %718 = vmatpush.msra.mxu0 0.0
        %719 = vmatpush.msra.mxu0 0.0
        %720 = vmatpush.msra.mxu0 0.0
        %721 = vmatpush.msra.mxu0 0.0
        %722 = vmatpush.msra.mxu0 %v704
        %723 = vmatpush.msra.mxu0 %v703
        %724 = vmatmul.f32.gmra.mxu0 %v706
        %v725 = vpop.f32.mrf.mxu0
        %v726 = vadd.f32 0.0, %v725
        %727 = vdwg.mxu0
        %v728 = vld [vmem:[%s429] sm:$0xff]
        %v729 = vld [vmem:[%s341 + $0x30] sm:$0xff]
        %v730 = vld [vmem:[%s341 + $0x38] sm:$0xff]
        %v732 = vsel %vm222, %v728, 0
        %734 = vmatpush.msra.mxu0 0.0
        %735 = vmatpush.msra.mxu0 0.0
        %736 = vmatpush.msra.mxu0 0.0
        %737 = vmatpush.msra.mxu0 0.0
        %738 = vmatpush.msra.mxu0 0.0
        %739 = vmatpush.msra.mxu0 0.0
        %740 = vmatpush.msra.mxu0 0.0
        %741 = vmatpush.msra.mxu0 0.0
        %742 = vmatpush.msra.mxu0 0.0
        %743 = vmatpush.msra.mxu0 0.0
        %744 = vmatpush.msra.mxu0 0.0
        %745 = vmatpush.msra.mxu0 0.0
        %746 = vmatpush.msra.mxu0 0.0
        %747 = vmatpush.msra.mxu0 0.0
        %748 = vmatpush.msra.mxu0 %v730
        %749 = vmatpush.msra.mxu0 %v729
        %750 = vmatmul.f32.gmra.mxu0 %v732
        %v751 = vpop.f32.mrf.mxu0
        %v752 = vadd.f32 0.0, %v751
        %753 = vdwg.mxu0
        %s754 = sld [smem:[#allocation3]]
        %s755 = sld [smem:[#allocation3 + $0x1]]
        %v756 = vsub.f32 %v752, %v726
        %v757 = vstv %s754
        %v758 = vmul.f32 %v757, %v756
        %v759 = vstv %s755
        %v760 = vadd.f32 %v758, %v759
        %v761 = vmax.f32 %v760, 0.0
        %v762 = vmin.f32 %v761, 1.0
        %v763 = vadd.f32 %v726, %v762
        %v764 = vld [vmem:[%s466] sm:$0xff]
        %v765 = vld [vmem:[%s394 + $0x30] sm:$0xff]
        %v766 = vld [vmem:[%s394 + $0x38] sm:$0xff]
        %v768 = vsel %vm222, %v764, 0
        %770 = vmatpush.msra.mxu0 0.0
        %771 = vmatpush.msra.mxu0 0.0
        %772 = vmatpush.msra.mxu0 0.0
        %773 = vmatpush.msra.mxu0 0.0
        %774 = vmatpush.msra.mxu0 0.0
        %775 = vmatpush.msra.mxu0 0.0
        %776 = vmatpush.msra.mxu0 0.0
        %777 = vmatpush.msra.mxu0 0.0
        %778 = vmatpush.msra.mxu0 0.0
        %779 = vmatpush.msra.mxu0 0.0
        %780 = vmatpush.msra.mxu0 0.0
        %781 = vmatpush.msra.mxu0 0.0
        %782 = vmatpush.msra.mxu0 0.0
        %783 = vmatpush.msra.mxu0 0.0
        %784 = vmatpush.msra.mxu0 %v766
        %785 = vmatpush.msra.mxu0 %v765
        %786 = vmatmul.f32.gmra.mxu0 %v768
        %v787 = vpop.f32.mrf.mxu0
        %v788 = vadd.f32 0.0, %v787
        %789 = vdwg.mxu0
        %s790 = sld [smem:[#allocation3 + $0x2]]
        %s791 = sld [smem:[#allocation3 + $0x3]]
        %v792 = vsub.f32 %v788, %v752
        %v793 = vstv %s790
        %v794 = vmul.f32 %v793, %v792
        %v795 = vstv %s791
        %v796 = vadd.f32 %v794, %v795
        %v797 = vmax.f32 %v796, 0.0
        %v798 = vmin.f32 %v797, 1.0
        %v799 = vadd.f32 %v763, %v798
        %800 = vst.msk [vmem:[%s211 + $0x18] sm:$0xff] %vm288, %v799
        %p801 = scmp.lt.s32.totalorder %s16, 1
        %s802 = scalar_select %p801, %s16, 1
        %s803 = smul.addr %s802, 4
        %s804 = smul.addr %s803, 8
        %s805 = scalar_lea.vmem %s4, %s804
        // Predicated region
        $region41: #{tpu_custom_call.1} parent=35 // pred_check
          %p806 = pneg %p123
        $region42: #{tpu_custom_call.1} parent=35 // pred_check_branch
          %808 = sbr.rel (%p806) target = $region44
        $region43: #{tpu_custom_call.1} parent=35 // pred_region
          _
        $region44: #{tpu_custom_call.1} parent=35 // pred_fallthru
          _
      $region36: #{tpu_custom_call.1} parent=5 // pred_fallthru
        _
      %p809 = scmp.le.s32.totalorder 2, %s11
      // Predicated region
      $region45: #{tpu_custom_call.1} parent=5 // pred_check
        %p810 = pneg %p809
      $region46: #{tpu_custom_call.1} parent=5 // pred_check_branch
        %812 = sbr.rel (%p810) target = $region48
      $region47: #{tpu_custom_call.1} parent=5 // pred_region
        %s813 = ssub.s32 %s11, 2
        // Predicated region
        $region49: #{tpu_custom_call.1} parent=47 // pred_check
          %p814 = pneg %p129
        $region50: #{tpu_custom_call.1} parent=47 // pred_check_branch
          %816 = sbr.rel (%p814) target = $region52
        $region51: #{tpu_custom_call.1} parent=47 // pred_region
          %p817 = scmp.lt.s32.totalorder %s17, 1
          %s818 = scalar_select %p817, %s17, 1
          %s819 = smul.addr %s818, 4
          %s820 = smul.addr %s819, 8
          %s821 = scalar_lea.vmem %s4, %s820
        $region52: #{tpu_custom_call.1} parent=47 // pred_fallthru
          _
      $region48: #{tpu_custom_call.1} parent=5 // pred_fallthru
        _
    $region6: #{tpu_custom_call.1} parent=1 // loop_footer
      %s15 = sadd.s32 1, %s11
    $region7: #{tpu_custom_call.1} parent=1 // loop_footer_branch
      %10 = sbr.rel target = $region3
    $region8: #{tpu_custom_call.1} parent=1 // loop_exit
      _
    %822 = vsyncpa [#allocation4], 1
    %s823 = scalar_lea.sflag [#allocation4], 1
    %824 = vsyncpa %s823, 1

</llo_original>
